<compile_context>
chip_gen: v7x
topology: tpu7x:2x2x1
jax: 0.10.0
libtpu: 0.0.40
codegen_flags: <defaults>
</compile_context>

<pallas_src>
import functools
import math

import jax
import jax.numpy as jnp
from jax import lax
from jax.experimental import pallas as pl
from jax.experimental.pallas import tpu as pltpu


def _sinkhorn_kernel(x_ref, y_ref, cost_ref, pi_ref, c_ref, *,
                     eps, max_iter, thresh, check_every):
    p1, d = x_ref.shape[1], x_ref.shape[2]
    p2 = y_ref.shape[1]

    # ---------------- cost matrix C[i, j] = sum_d (x_i - y_j)^2 ----------------
    if d >= 16:
        # MXU path: ||x||^2 + ||y||^2 - 2 <x, y>
        x = x_ref[0].astype(jnp.float32)                      # (P1, D)
        y = y_ref[0].astype(jnp.float32)                      # (P2, D)
        xx = jnp.sum(x * x, axis=-1, keepdims=True)           # (P1, 1)
        yy = jnp.sum(y * y, axis=-1, keepdims=True)           # (P2, 1)
        xy = lax.dot_general(x, y, (((1,), (1,)), ((), ())),
                             preferred_element_type=jnp.float32)  # (P1, P2)
        c = xx + yy.T - 2.0 * xy
    else:
        # VPU broadcast path for tiny feature dims (e.g. D = 2).
        x3 = x_ref[...].astype(jnp.float32)                   # (1, P1, D)
        y3 = y_ref[...].astype(jnp.float32)                   # (1, P2, D)
        c3 = jnp.zeros((1, p1, p2), jnp.float32)
        for di in range(d):
            diff = x3[:, :, di][:, :, None] - y3[:, :, di][:, None, :]
            c3 = c3 + diff * diff
        c = c3[0]                                              # (P1, P2)

    # ---------------- eps-scaled log-domain Sinkhorn --------------------------
    neg_c_over_eps = c * (-1.0 / eps)                          # (P1, P2)
    log_mu = float(math.log(1.0 / p1 + 1e-8))                  # scalar consts
    log_nu = float(math.log(1.0 / p2 + 1e-8))

    def lse_rows(m):                                           # over j -> (P1, 1)
        mx = jnp.max(m, axis=1, keepdims=True)
        return jnp.log(jnp.sum(jnp.exp(m - mx), axis=1, keepdims=True)) + mx

    def lse_cols(m):                                           # over i -> (1, P2)
        mx = jnp.max(m, axis=0, keepdims=True)
        return jnp.log(jnp.sum(jnp.exp(m - mx), axis=0, keepdims=True)) + mx

    def one_step(u_s, v_s):
        u_prev = u_s
        m = neg_c_over_eps + u_s + v_s
        u_s = (log_mu - lse_rows(m)) + u_s
        m = neg_c_over_eps + u_s + v_s
        v_s = (log_nu - lse_cols(m)) + v_s
        return u_s, v_s, u_prev

    def body(carry):
        it, u_s, v_s, _ = carry

        def inner(_, uvp):
            u_s, v_s, _ = uvp
            return one_step(u_s, v_s)

        u_s, v_s, u_prev = lax.fori_loop(0, check_every, inner,
                                         (u_s, v_s, u_s), unroll=True)
        # same criterion as PyTorch (err = sum_i |u_i - u_i^prev|), evaluated
        # at multiples of check_every; u = eps * u_s.
        err = eps * jnp.sum(jnp.abs(u_s - u_prev))
        return (it + check_every, u_s, v_s, err)

    def cond(carry):
        it, _, _, err = carry
        return jnp.logical_and(it < max_iter, err >= thresh)

    u0 = jnp.zeros((p1, 1), jnp.float32)
    v0 = jnp.zeros((1, p2), jnp.float32)
    init = (jnp.int32(0), u0, v0, jnp.float32(jnp.inf))
    _, u_s, v_s, _ = lax.while_loop(cond, body, init)

    # ---------------- transport plan & cost ------------------------------------
    m = neg_c_over_eps + u_s + v_s
    pi = jnp.exp(m)                                            # (P1, P2)

    c_ref[0] = c.astype(c_ref.dtype)
    pi_ref[0] = pi.astype(pi_ref.dtype)
    cost_ref[0] = jnp.sum(pi * c, axis=(0, 1), keepdims=True).astype(cost_ref.dtype)


def sinkhorn_distance(x, y, *, eps, max_iter, reduction="none", check_every=5):
    """Pallas TPU implementation of SinkhornDistance.forward.

    x: (N, P1, D), y: (N, P2, D).  Returns (cost, pi, C) matching the PyTorch
    module (cost reduced per `reduction`).  Early stopping is evaluated
    per-batch every `check_every` iterations (vs. batch-mean every iteration
    in the reference); converged results agree to the threshold tolerance.
    """
    n, p1, d = x.shape
    _, p2, _ = y.shape
    max_iter = int(max_iter)
    check_every = max(1, min(int(check_every), max(max_iter, 1)))

    kernel = functools.partial(
        _sinkhorn_kernel, eps=float(eps), max_iter=max_iter,
        thresh=0.1, check_every=check_every,
    )

    itemsize = jnp.dtype(x.dtype).itemsize
    bytes_accessed = (x.size + y.size + n + 2 * n * p1 * p2) * itemsize
    cost_est = pl.CostEstimate(
        flops=int(max_iter * n * p1 * p2 * 12 + n * p1 * p2 * (3 * d + 2)),
        transcendentals=int(max_iter * n * (2 * p1 * p2 + p1 + p2) + n * p1 * p2),
        bytes_accessed=int(bytes_accessed),
    )

    cost3, pi, c = pl.pallas_call(
        kernel,
        grid=(n,),
        in_specs=[
            pl.BlockSpec((1, p1, d), lambda b: (b, 0, 0)),
            pl.BlockSpec((1, p2, d), lambda b: (b, 0, 0)),
        ],
        out_specs=[
            pl.BlockSpec((1, 1, 1), lambda b: (b, 0, 0)),
            pl.BlockSpec((1, p1, p2), lambda b: (b, 0, 0)),
            pl.BlockSpec((1, p1, p2), lambda b: (b, 0, 0)),
        ],
        out_shape=(
            jax.ShapeDtypeStruct((n, 1, 1), x.dtype),
            jax.ShapeDtypeStruct((n, p1, p2), x.dtype),
            jax.ShapeDtypeStruct((n, p1, p2), x.dtype),
        ),
        compiler_params=pltpu.CompilerParams(
            dimension_semantics=("parallel",),
        ),
        cost_estimate=cost_est,
    )(x, y)

    cost = cost3.reshape(n)
    if reduction == "mean":
        cost = jnp.mean(cost)
    elif reduction == "sum":
        cost = jnp.sum(cost)
    return cost, pi, c


if __name__ == "__main__":
    key = jax.random.PRNGKey(0)
    kx, ky = jax.random.split(key)

    # Small batched point clouds: N=2 batches, 16 points each, 2-D coordinates.
    x = jax.random.normal(kx, (2, 16, 2), dtype=jnp.float32)
    y = jax.random.normal(ky, (2, 16, 2), dtype=jnp.float32)

    fn = jax.jit(
        functools.partial(sinkhorn_distance, eps=0.1, max_iter=100, reduction="none")
    )
    cost, pi, C = fn(x, y)
    jax.block_until_ready((cost, pi, C))

    assert cost.shape == (2,)
    assert pi.shape == (2, 16, 16)
    assert C.shape == (2, 16, 16)
    assert bool(jnp.all(jnp.isfinite(cost)))
    assert bool(jnp.all(jnp.isfinite(pi)))
    assert bool(jnp.all(jnp.isfinite(C)))
    # Marginals of the coupling should approximately match the uniform measures.
    assert bool(jnp.allclose(jnp.sum(pi, axis=-1), 1.0 / 16, atol=2e-2))
    print("KERNEL_OK")
</pallas_src>

<mosaic_0001>
module attributes {stable_mosaic.version = 11 : i64} {
  func.func @_sinkhorn_kernel(%arg0: i32, %arg1: memref<1x16x2xf32, #tpu.memory_space<vmem>>, %arg2: memref<1x16x2xf32, #tpu.memory_space<vmem>>, %arg3: memref<1x1x1xf32, #tpu.memory_space<vmem>>, %arg4: memref<1x16x16xf32, #tpu.memory_space<vmem>>, %arg5: memref<1x16x16xf32, #tpu.memory_space<vmem>>) attributes {dimension_semantics = [#tpu.dimension_semantics<parallel>], iteration_bounds = array<i64: 2>, scalar_prefetch = 0 : i64, scratch_operands = 0 : i64, tpu.core_type = #tpu.core_type<tc>, window_params = [{transform_indices = @transform_0, window_bounds = array<i64: 1, 16, 2>}, {transform_indices = @transform_1, window_bounds = array<i64: 1, 16, 2>}, {transform_indices = @transform_2, window_bounds = array<i64: 1, 1, 1>}, {transform_indices = @transform_3, window_bounds = array<i64: 1, 16, 16>}, {transform_indices = @transform_4, window_bounds = array<i64: 1, 16, 16>}]} {
    %c0 = arith.constant 0 : index
    %c0_0 = arith.constant 0 : index
    %c0_1 = arith.constant 0 : index
    %0 = vector.load %arg1[%c0, %c0_0, %c0_1] : memref<1x16x2xf32, #tpu.memory_space<vmem>>, vector<1x16x2xf32>
    %c0_2 = arith.constant 0 : index
    %c0_3 = arith.constant 0 : index
    %c0_4 = arith.constant 0 : index
    %1 = vector.load %arg2[%c0_2, %c0_3, %c0_4] : memref<1x16x2xf32, #tpu.memory_space<vmem>>, vector<1x16x2xf32>
    %cst = arith.constant 0.000000e+00 : f32
    %2 = vector.broadcast %cst : f32 to vector<1x16x16xf32>
    %3 = vector.extract_strided_slice %0 {offsets = [0, 0, 0], sizes = [1, 16, 1], strides = [1, 1, 1]} : vector<1x16x2xf32> to vector<1x16x1xf32>
    %4 = vector.shape_cast %3 : vector<1x16x1xf32> to vector<1x16xf32>
    %5 = vector.shape_cast %4 : vector<1x16xf32> to vector<1x16x1xf32>
    %6 = vector.extract_strided_slice %1 {offsets = [0, 0, 0], sizes = [1, 16, 1], strides = [1, 1, 1]} : vector<1x16x2xf32> to vector<1x16x1xf32>
    %7 = vector.shape_cast %6 : vector<1x16x1xf32> to vector<1x16xf32>
    %8 = vector.shape_cast %7 : vector<1x16xf32> to vector<1x1x16xf32>
    %9 = vector.broadcast %5 : vector<1x16x1xf32> to vector<1x16x16xf32>
    %10 = vector.broadcast %8 : vector<1x1x16xf32> to vector<1x16x16xf32>
    %11 = arith.subf %9, %10 : vector<1x16x16xf32>
    %12 = arith.mulf %11, %11 : vector<1x16x16xf32>
    %13 = arith.addf %2, %12 : vector<1x16x16xf32>
    %14 = vector.extract_strided_slice %0 {offsets = [0, 0, 1], sizes = [1, 16, 1], strides = [1, 1, 1]} : vector<1x16x2xf32> to vector<1x16x1xf32>
    %15 = vector.shape_cast %14 : vector<1x16x1xf32> to vector<1x16xf32>
    %16 = vector.shape_cast %15 : vector<1x16xf32> to vector<1x16x1xf32>
    %17 = vector.extract_strided_slice %1 {offsets = [0, 0, 1], sizes = [1, 16, 1], strides = [1, 1, 1]} : vector<1x16x2xf32> to vector<1x16x1xf32>
    %18 = vector.shape_cast %17 : vector<1x16x1xf32> to vector<1x16xf32>
    %19 = vector.shape_cast %18 : vector<1x16xf32> to vector<1x1x16xf32>
    %20 = vector.broadcast %16 : vector<1x16x1xf32> to vector<1x16x16xf32>
    %21 = vector.broadcast %19 : vector<1x1x16xf32> to vector<1x16x16xf32>
    %22 = arith.subf %20, %21 : vector<1x16x16xf32>
    %23 = arith.mulf %22, %22 : vector<1x16x16xf32>
    %24 = arith.addf %13, %23 : vector<1x16x16xf32>
    %25 = vector.shape_cast %24 : vector<1x16x16xf32> to vector<16x16xf32>
    %cst_5 = arith.constant -1.000000e+01 : f32
    %26 = vector.broadcast %cst_5 : f32 to vector<16x16xf32>
    %27 = arith.mulf %25, %26 : vector<16x16xf32>
    %cst_6 = arith.constant 0.000000e+00 : f32
    %28 = vector.broadcast %cst_6 : f32 to vector<16x1xf32>
    %cst_7 = arith.constant 0.000000e+00 : f32
    %29 = vector.broadcast %cst_7 : f32 to vector<1x16xf32>
    %c0_i32 = arith.constant 0 : i32
    %cst_8 = arith.constant 0x7F800000 : f32
    %30:4 = scf.while (%arg6 = %c0_i32, %arg7 = %28, %arg8 = %29, %arg9 = %cst_8) : (i32, vector<16x1xf32>, vector<1x16xf32>, f32) -> (i32, vector<16x1xf32>, vector<1x16xf32>, f32) {
      %c100_i32 = arith.constant 100 : i32
      %51 = arith.cmpi slt, %arg6, %c100_i32 : i32
      %cst_19 = arith.constant 1.000000e-01 : f32
      %52 = arith.cmpf oge, %arg9, %cst_19 : f32
      %53 = arith.andi %51, %52 : i1
      scf.condition(%53) %arg6, %arg7, %arg8, %arg9 : i32, vector<16x1xf32>, vector<1x16xf32>, f32
    } do {
    ^bb0(%arg6: i32, %arg7: vector<16x1xf32>, %arg8: vector<1x16xf32>, %arg9: f32):
      %c0_i32_19 = arith.constant 0 : i32
      %51 = vector.broadcast %arg7 : vector<16x1xf32> to vector<16x16xf32>
      %52 = arith.addf %27, %51 : vector<16x16xf32>
      %53 = vector.broadcast %arg8 : vector<1x16xf32> to vector<16x16xf32>
      %54 = arith.addf %52, %53 : vector<16x16xf32>
      %cst_20 = arith.constant dense<0xFF800000> : vector<16xf32>
      %55 = vector.multi_reduction <maximumf>, %54, %cst_20 [1] : vector<16x16xf32> to vector<16xf32>
      %56 = vector.shape_cast %55 : vector<16xf32> to vector<16x1xf32>
      %57 = vector.broadcast %56 : vector<16x1xf32> to vector<16x16xf32>
      %58 = arith.subf %54, %57 : vector<16x16xf32>
      %59 = math.exp %58 : vector<16x16xf32>
      %cst_21 = arith.constant dense<0.000000e+00> : vector<16xf32>
      %60 = vector.multi_reduction <add>, %59, %cst_21 [1] : vector<16x16xf32> to vector<16xf32>
      %61 = vector.shape_cast %60 : vector<16xf32> to vector<16x1xf32>
      %62 = math.log %61 : vector<16x1xf32>
      %63 = arith.addf %62, %56 : vector<16x1xf32>
      %cst_22 = arith.constant -2.77258849 : f32
      %64 = vector.broadcast %cst_22 : f32 to vector<16x1xf32>
      %65 = arith.subf %64, %63 : vector<16x1xf32>
      %66 = arith.addf %65, %arg7 : vector<16x1xf32>
      %67 = vector.broadcast %66 : vector<16x1xf32> to vector<16x16xf32>
      %68 = arith.addf %27, %67 : vector<16x16xf32>
      %69 = vector.broadcast %arg8 : vector<1x16xf32> to vector<16x16xf32>
      %70 = arith.addf %68, %69 : vector<16x16xf32>
      %cst_23 = arith.constant dense<0xFF800000> : vector<16xf32>
      %71 = vector.multi_reduction <maximumf>, %70, %cst_23 [0] : vector<16x16xf32> to vector<16xf32>
      %72 = vector.shape_cast %71 : vector<16xf32> to vector<1x16xf32>
      %73 = vector.broadcast %72 : vector<1x16xf32> to vector<16x16xf32>
      %74 = arith.subf %70, %73 : vector<16x16xf32>
      %75 = math.exp %74 : vector<16x16xf32>
      %cst_24 = arith.constant dense<0.000000e+00> : vector<16xf32>
      %76 = vector.multi_reduction <add>, %75, %cst_24 [0] : vector<16x16xf32> to vector<16xf32>
      %77 = vector.shape_cast %76 : vector<16xf32> to vector<1x16xf32>
      %78 = math.log %77 : vector<1x16xf32>
      %79 = arith.addf %78, %72 : vector<1x16xf32>
      %cst_25 = arith.constant -2.77258849 : f32
      %80 = vector.broadcast %cst_25 : f32 to vector<1x16xf32>
      %81 = arith.subf %80, %79 : vector<1x16xf32>
      %82 = arith.addf %81, %arg8 : vector<1x16xf32>
      %c1_i32 = arith.constant 1 : i32
      %83 = vector.broadcast %66 : vector<16x1xf32> to vector<16x16xf32>
      %84 = arith.addf %27, %83 : vector<16x16xf32>
      %85 = vector.broadcast %82 : vector<1x16xf32> to vector<16x16xf32>
      %86 = arith.addf %84, %85 : vector<16x16xf32>
      %cst_26 = arith.constant dense<0xFF800000> : vector<16xf32>
      %87 = vector.multi_reduction <maximumf>, %86, %cst_26 [1] : vector<16x16xf32> to vector<16xf32>
      %88 = vector.shape_cast %87 : vector<16xf32> to vector<16x1xf32>
      %89 = vector.broadcast %88 : vector<16x1xf32> to vector<16x16xf32>
      %90 = arith.subf %86, %89 : vector<16x16xf32>
      %91 = math.exp %90 : vector<16x16xf32>
      %cst_27 = arith.constant dense<0.000000e+00> : vector<16xf32>
      %92 = vector.multi_reduction <add>, %91, %cst_27 [1] : vector<16x16xf32> to vector<16xf32>
      %93 = vector.shape_cast %92 : vector<16xf32> to vector<16x1xf32>
      %94 = math.log %93 : vector<16x1xf32>
      %95 = arith.addf %94, %88 : vector<16x1xf32>
      %cst_28 = arith.constant -2.77258849 : f32
      %96 = vector.broadcast %cst_28 : f32 to vector<16x1xf32>
      %97 = arith.subf %96, %95 : vector<16x1xf32>
      %98 = arith.addf %97, %66 : vector<16x1xf32>
      %99 = vector.broadcast %98 : vector<16x1xf32> to vector<16x16xf32>
      %100 = arith.addf %27, %99 : vector<16x16xf32>
      %101 = vector.broadcast %82 : vector<1x16xf32> to vector<16x16xf32>
      %102 = arith.addf %100, %101 : vector<16x16xf32>
      %cst_29 = arith.constant dense<0xFF800000> : vector<16xf32>
      %103 = vector.multi_reduction <maximumf>, %102, %cst_29 [0] : vector<16x16xf32> to vector<16xf32>
      %104 = vector.shape_cast %103 : vector<16xf32> to vector<1x16xf32>
      %105 = vector.broadcast %104 : vector<1x16xf32> to vector<16x16xf32>
      %106 = arith.subf %102, %105 : vector<16x16xf32>
      %107 = math.exp %106 : vector<16x16xf32>
      %cst_30 = arith.constant dense<0.000000e+00> : vector<16xf32>
      %108 = vector.multi_reduction <add>, %107, %cst_30 [0] : vector<16x16xf32> to vector<16xf32>
      %109 = vector.shape_cast %108 : vector<16xf32> to vector<1x16xf32>
      %110 = math.log %109 : vector<1x16xf32>
      %111 = arith.addf %110, %104 : vector<1x16xf32>
      %cst_31 = arith.constant -2.77258849 : f32
      %112 = vector.broadcast %cst_31 : f32 to vector<1x16xf32>
      %113 = arith.subf %112, %111 : vector<1x16xf32>
      %114 = arith.addf %113, %82 : vector<1x16xf32>
      %c2_i32 = arith.constant 2 : i32
      %115 = vector.broadcast %98 : vector<16x1xf32> to vector<16x16xf32>
      %116 = arith.addf %27, %115 : vector<16x16xf32>
      %117 = vector.broadcast %114 : vector<1x16xf32> to vector<16x16xf32>
      %118 = arith.addf %116, %117 : vector<16x16xf32>
      %cst_32 = arith.constant dense<0xFF800000> : vector<16xf32>
      %119 = vector.multi_reduction <maximumf>, %118, %cst_32 [1] : vector<16x16xf32> to vector<16xf32>
      %120 = vector.shape_cast %119 : vector<16xf32> to vector<16x1xf32>
      %121 = vector.broadcast %120 : vector<16x1xf32> to vector<16x16xf32>
      %122 = arith.subf %118, %121 : vector<16x16xf32>
      %123 = math.exp %122 : vector<16x16xf32>
      %cst_33 = arith.constant dense<0.000000e+00> : vector<16xf32>
      %124 = vector.multi_reduction <add>, %123, %cst_33 [1] : vector<16x16xf32> to vector<16xf32>
      %125 = vector.shape_cast %124 : vector<16xf32> to vector<16x1xf32>
      %126 = math.log %125 : vector<16x1xf32>
      %127 = arith.addf %126, %120 : vector<16x1xf32>
      %cst_34 = arith.constant -2.77258849 : f32
      %128 = vector.broadcast %cst_34 : f32 to vector<16x1xf32>
      %129 = arith.subf %128, %127 : vector<16x1xf32>
      %130 = arith.addf %129, %98 : vector<16x1xf32>
      %131 = vector.broadcast %130 : vector<16x1xf32> to vector<16x16xf32>
      %132 = arith.addf %27, %131 : vector<16x16xf32>
      %133 = vector.broadcast %114 : vector<1x16xf32> to vector<16x16xf32>
      %134 = arith.addf %132, %133 : vector<16x16xf32>
      %cst_35 = arith.constant dense<0xFF800000> : vector<16xf32>
      %135 = vector.multi_reduction <maximumf>, %134, %cst_35 [0] : vector<16x16xf32> to vector<16xf32>
      %136 = vector.shape_cast %135 : vector<16xf32> to vector<1x16xf32>
      %137 = vector.broadcast %136 : vector<1x16xf32> to vector<16x16xf32>
      %138 = arith.subf %134, %137 : vector<16x16xf32>
      %139 = math.exp %138 : vector<16x16xf32>
      %cst_36 = arith.constant dense<0.000000e+00> : vector<16xf32>
      %140 = vector.multi_reduction <add>, %139, %cst_36 [0] : vector<16x16xf32> to vector<16xf32>
      %141 = vector.shape_cast %140 : vector<16xf32> to vector<1x16xf32>
      %142 = math.log %141 : vector<1x16xf32>
      %143 = arith.addf %142, %136 : vector<1x16xf32>
      %cst_37 = arith.constant -2.77258849 : f32
      %144 = vector.broadcast %cst_37 : f32 to vector<1x16xf32>
      %145 = arith.subf %144, %143 : vector<1x16xf32>
      %146 = arith.addf %145, %114 : vector<1x16xf32>
      %c3_i32 = arith.constant 3 : i32
      %147 = vector.broadcast %130 : vector<16x1xf32> to vector<16x16xf32>
      %148 = arith.addf %27, %147 : vector<16x16xf32>
      %149 = vector.broadcast %146 : vector<1x16xf32> to vector<16x16xf32>
      %150 = arith.addf %148, %149 : vector<16x16xf32>
      %cst_38 = arith.constant dense<0xFF800000> : vector<16xf32>
      %151 = vector.multi_reduction <maximumf>, %150, %cst_38 [1] : vector<16x16xf32> to vector<16xf32>
      %152 = vector.shape_cast %151 : vector<16xf32> to vector<16x1xf32>
      %153 = vector.broadcast %152 : vector<16x1xf32> to vector<16x16xf32>
      %154 = arith.subf %150, %153 : vector<16x16xf32>
      %155 = math.exp %154 : vector<16x16xf32>
      %cst_39 = arith.constant dense<0.000000e+00> : vector<16xf32>
      %156 = vector.multi_reduction <add>, %155, %cst_39 [1] : vector<16x16xf32> to vector<16xf32>
      %157 = vector.shape_cast %156 : vector<16xf32> to vector<16x1xf32>
      %158 = math.log %157 : vector<16x1xf32>
      %159 = arith.addf %158, %152 : vector<16x1xf32>
      %cst_40 = arith.constant -2.77258849 : f32
      %160 = vector.broadcast %cst_40 : f32 to vector<16x1xf32>
      %161 = arith.subf %160, %159 : vector<16x1xf32>
      %162 = arith.addf %161, %130 : vector<16x1xf32>
      %163 = vector.broadcast %162 : vector<16x1xf32> to vector<16x16xf32>
      %164 = arith.addf %27, %163 : vector<16x16xf32>
      %165 = vector.broadcast %146 : vector<1x16xf32> to vector<16x16xf32>
      %166 = arith.addf %164, %165 : vector<16x16xf32>
      %cst_41 = arith.constant dense<0xFF800000> : vector<16xf32>
      %167 = vector.multi_reduction <maximumf>, %166, %cst_41 [0] : vector<16x16xf32> to vector<16xf32>
      %168 = vector.shape_cast %167 : vector<16xf32> to vector<1x16xf32>
      %169 = vector.broadcast %168 : vector<1x16xf32> to vector<16x16xf32>
      %170 = arith.subf %166, %169 : vector<16x16xf32>
      %171 = math.exp %170 : vector<16x16xf32>
      %cst_42 = arith.constant dense<0.000000e+00> : vector<16xf32>
      %172 = vector.multi_reduction <add>, %171, %cst_42 [0] : vector<16x16xf32> to vector<16xf32>
      %173 = vector.shape_cast %172 : vector<16xf32> to vector<1x16xf32>
      %174 = math.log %173 : vector<1x16xf32>
      %175 = arith.addf %174, %168 : vector<1x16xf32>
      %cst_43 = arith.constant -2.77258849 : f32
      %176 = vector.broadcast %cst_43 : f32 to vector<1x16xf32>
      %177 = arith.subf %176, %175 : vector<1x16xf32>
      %178 = arith.addf %177, %146 : vector<1x16xf32>
      %c4_i32 = arith.constant 4 : i32
      %179 = vector.broadcast %162 : vector<16x1xf32> to vector<16x16xf32>
      %180 = arith.addf %27, %179 : vector<16x16xf32>
      %181 = vector.broadcast %178 : vector<1x16xf32> to vector<16x16xf32>
      %182 = arith.addf %180, %181 : vector<16x16xf32>
      %cst_44 = arith.constant dense<0xFF800000> : vector<16xf32>
      %183 = vector.multi_reduction <maximumf>, %182, %cst_44 [1] : vector<16x16xf32> to vector<16xf32>
      %184 = vector.shape_cast %183 : vector<16xf32> to vector<16x1xf32>
      %185 = vector.broadcast %184 : vector<16x1xf32> to vector<16x16xf32>
      %186 = arith.subf %182, %185 : vector<16x16xf32>
      %187 = math.exp %186 : vector<16x16xf32>
      %cst_45 = arith.constant dense<0.000000e+00> : vector<16xf32>
      %188 = vector.multi_reduction <add>, %187, %cst_45 [1] : vector<16x16xf32> to vector<16xf32>
      %189 = vector.shape_cast %188 : vector<16xf32> to vector<16x1xf32>
      %190 = math.log %189 : vector<16x1xf32>
      %191 = arith.addf %190, %184 : vector<16x1xf32>
      %cst_46 = arith.constant -2.77258849 : f32
      %192 = vector.broadcast %cst_46 : f32 to vector<16x1xf32>
      %193 = arith.subf %192, %191 : vector<16x1xf32>
      %194 = arith.addf %193, %162 : vector<16x1xf32>
      %195 = vector.broadcast %194 : vector<16x1xf32> to vector<16x16xf32>
      %196 = arith.addf %27, %195 : vector<16x16xf32>
      %197 = vector.broadcast %178 : vector<1x16xf32> to vector<16x16xf32>
      %198 = arith.addf %196, %197 : vector<16x16xf32>
      %cst_47 = arith.constant dense<0xFF800000> : vector<16xf32>
      %199 = vector.multi_reduction <maximumf>, %198, %cst_47 [0] : vector<16x16xf32> to vector<16xf32>
      %200 = vector.shape_cast %199 : vector<16xf32> to vector<1x16xf32>
      %201 = vector.broadcast %200 : vector<1x16xf32> to vector<16x16xf32>
      %202 = arith.subf %198, %201 : vector<16x16xf32>
      %203 = math.exp %202 : vector<16x16xf32>
      %cst_48 = arith.constant dense<0.000000e+00> : vector<16xf32>
      %204 = vector.multi_reduction <add>, %203, %cst_48 [0] : vector<16x16xf32> to vector<16xf32>
      %205 = vector.shape_cast %204 : vector<16xf32> to vector<1x16xf32>
      %206 = math.log %205 : vector<1x16xf32>
      %207 = arith.addf %206, %200 : vector<1x16xf32>
      %cst_49 = arith.constant -2.77258849 : f32
      %208 = vector.broadcast %cst_49 : f32 to vector<1x16xf32>
      %209 = arith.subf %208, %207 : vector<1x16xf32>
      %210 = arith.addf %209, %178 : vector<1x16xf32>
      %c5_i32 = arith.constant 5 : i32
      %211 = arith.subf %194, %162 : vector<16x1xf32>
      %212 = math.absf %211 : vector<16x1xf32>
      %213 = vector.shape_cast %212 : vector<16x1xf32> to vector<1x16x1xf32>
      %cst_50 = arith.constant dense<0.000000e+00> : vector<1xf32>
      %214 = vector.multi_reduction <add>, %213, %cst_50 [1, 2] : vector<1x16x1xf32> to vector<1xf32>
      %215 = vector.shape_cast %214 : vector<1xf32> to vector<1x1x1xf32>
      %216 = vector.extract %215[0, 0, 0] : f32 from vector<1x1x1xf32>
      %cst_51 = arith.constant 1.000000e-01 : f32
      %217 = arith.mulf %cst_51, %216 : f32
      %c5_i32_52 = arith.constant 5 : i32
      %218 = arith.addi %arg6, %c5_i32_52 : i32
      scf.yield %218, %194, %210, %217 : i32, vector<16x1xf32>, vector<1x16xf32>, f32
    }
    %31 = vector.broadcast %30#1 : vector<16x1xf32> to vector<16x16xf32>
    %32 = arith.addf %27, %31 : vector<16x16xf32>
    %33 = vector.broadcast %30#2 : vector<1x16xf32> to vector<16x16xf32>
    %34 = arith.addf %32, %33 : vector<16x16xf32>
    %35 = math.exp %34 : vector<16x16xf32>
    %c0_9 = arith.constant 0 : index
    %c0_10 = arith.constant 0 : index
    %c0_11 = arith.constant 0 : index
    %36 = vector.load %arg5[%c0_9, %c0_10, %c0_11] : memref<1x16x16xf32, #tpu.memory_space<vmem>>, vector<1x16x16xf32>
    %37 = vector.shape_cast %36 : vector<1x16x16xf32> to vector<16x16xf32>
    %38 = vector.shape_cast %25 : vector<16x16xf32> to vector<1x16x16xf32>
    tpu.vector_store %arg5[%c0_9, %c0_10, %c0_11], %38 {strides = array<i32>} : memref<1x16x16xf32, #tpu.memory_space<vmem>>, vector<1x16x16xf32>,
    %c0_12 = arith.constant 0 : index
    %c0_13 = arith.constant 0 : index
    %c0_14 = arith.constant 0 : index
    %39 = vector.load %arg4[%c0_12, %c0_13, %c0_14] : memref<1x16x16xf32, #tpu.memory_space<vmem>>, vector<1x16x16xf32>
    %40 = vector.shape_cast %39 : vector<1x16x16xf32> to vector<16x16xf32>
    %41 = vector.shape_cast %35 : vector<16x16xf32> to vector<1x16x16xf32>
    tpu.vector_store %arg4[%c0_12, %c0_13, %c0_14], %41 {strides = array<i32>} : memref<1x16x16xf32, #tpu.memory_space<vmem>>, vector<1x16x16xf32>,
    %42 = arith.mulf %35, %25 : vector<16x16xf32>
    %43 = vector.shape_cast %42 : vector<16x16xf32> to vector<1x16x16xf32>
    %cst_15 = arith.constant dense<0.000000e+00> : vector<1xf32>
    %44 = vector.multi_reduction <add>, %43, %cst_15 [1, 2] : vector<1x16x16xf32> to vector<1xf32>
    %45 = vector.shape_cast %44 : vector<1xf32> to vector<1x1x1xf32>
    %46 = vector.extract %45[0, 0, 0] : f32 from vector<1x1x1xf32>
    %47 = vector.broadcast %46 : f32 to vector<1x1xf32>
    %c0_16 = arith.constant 0 : index
    %c0_17 = arith.constant 0 : index
    %c0_18 = arith.constant 0 : index
    %48 = vector.load %arg3[%c0_16, %c0_17, %c0_18] : memref<1x1x1xf32, #tpu.memory_space<vmem>>, vector<1x1x1xf32>
    %49 = vector.shape_cast %48 : vector<1x1x1xf32> to vector<1x1xf32>
    %50 = vector.shape_cast %47 : vector<1x1xf32> to vector<1x1x1xf32>
    tpu.vector_store %arg3[%c0_16, %c0_17, %c0_18], %50 {strides = array<i32>} : memref<1x1x1xf32, #tpu.memory_space<vmem>>, vector<1x1x1xf32>,
    return
  }
  func.func @transform_0(%arg0: i32) -> (i32, i32, i32) {
    %c0_i32 = arith.constant 0 : i32
    %c0_i32_0 = arith.constant 0 : i32
    %c0_i32_1 = arith.constant 0 : i32
    return %arg0, %c0_i32, %c0_i32_0 : i32, i32, i32
  }
  func.func @transform_1(%arg0: i32) -> (i32, i32, i32) {
    %c0_i32 = arith.constant 0 : i32
    %c0_i32_0 = arith.constant 0 : i32
    %c0_i32_1 = arith.constant 0 : i32
    return %arg0, %c0_i32, %c0_i32_0 : i32, i32, i32
  }
  func.func @transform_2(%arg0: i32) -> (i32, i32, i32) {
    %c0_i32 = arith.constant 0 : i32
    %c0_i32_0 = arith.constant 0 : i32
    %c0_i32_1 = arith.constant 0 : i32
    return %arg0, %c0_i32, %c0_i32_0 : i32, i32, i32
  }
  func.func @transform_3(%arg0: i32) -> (i32, i32, i32) {
    %c0_i32 = arith.constant 0 : i32
    %c0_i32_0 = arith.constant 0 : i32
    %c0_i32_1 = arith.constant 0 : i32
    return %arg0, %c0_i32, %c0_i32_0 : i32, i32, i32
  }
  func.func @transform_4(%arg0: i32) -> (i32, i32, i32) {
    %c0_i32 = arith.constant 0 : i32
    %c0_i32_0 = arith.constant 0 : i32
    %c0_i32_1 = arith.constant 0 : i32
    return %arg0, %c0_i32, %c0_i32_0 : i32, i32, i32
  }
}

</mosaic_0001>

<llo_original>
// kernel: sinkhorn_distance.1
$region0: #{sinkhorn_distance.1}
  #allocation0 [shape = 'u32[]', space=smem, size = 0x4, offset = 0x4, fixed_abs, tag = 'smem constant byte address 0x4 - core index']
  #allocation1 [shape = 'u32[144,128]{1,0:T(1,128)}', space=vmem, size = 0x12000, scoped, tag = 'internal scratch']
  %s0 = inlined_call_operand.vmem [shape: f32[2,16,2], index: 0, kind: input, shape index: {}]
  %s1 = inlined_call_operand.vmem [shape: f32[2,16,2], index: 1, kind: input, shape index: {}]
  %s2 = inlined_call_operand.vmem [shape: f32[2,1,1], index: 2, kind: output, shape index: {0}]
  %s3 = inlined_call_operand.hbm [shape: f32[2,16,16], index: 3, kind: output, shape index: {1}]
  %s4 = inlined_call_operand.hbm [shape: f32[2,16,16], index: 4, kind: output, shape index: {2}]
  %5 = xla_tuple %s2, %s3, %s4
  %s6 = sld [smem:[#allocation0]]
  $region64: #{sinkhorn_distance.1} parent=0
    _
  %s8 = ssub.s32 1, %s6
  %s9 = scalar_select 0, %s8, %s6
  $region1: #{sinkhorn_distance.1} parent=0
    #allocation2 [shape = 'u8[16384]{0}', space=vmem, size = 0x4000, scoped, tag = 'output window, operand 1']
    #allocation3 [shape = 's32[2]{0}', space=sflag, size = 0x8, scoped, tag = 'scoped memory for sinkhorn_distance.1']
    #allocation4 [shape = 'u8[16384]{0}', space=vmem, size = 0x4000, scoped, tag = 'output window, operand 2']
    #allocation5 [shape = 's32[2]{0}', space=sflag, size = 0x8, scoped, tag = 'scoped memory for sinkhorn_distance.1']
    %10 = vsyncpa [#allocation3], 0
    %s11 = scalar_lea.sflag [#allocation3], 1
    %12 = vsyncpa %s11, 0
    %13 = vsyncpa [#allocation5], 0
    %s14 = scalar_lea.sflag [#allocation5], 1
    %15 = vsyncpa %s14, 0
    loop: start=0, step=1, limit=4
    $region2: #{sinkhorn_distance.1} parent=1 // loop_pre_header
      _
    $region3: #{sinkhorn_distance.1} parent=1 // loop_header
      %s17 = sphi 0, %s21
      %p18 = scmp.ge.s32.totalorder %s17, 4
      %s27 = sphi 0, %s29
      %s30 = sphi 0, %s27
      %s31 = sphi 0, %s30
      %s47 = sphi 0, %s31
      %s53 = sphi 0, %s55
      %s56 = sphi 0, %s53
      %s57 = sphi 0, %s56
      %s73 = sphi 0, %s57
      %s79 = sphi 0, %s81
      %s82 = sphi 0, %s79
      %s83 = sphi 0, %s82
      %s99 = sphi 0, %s83
      %s105 = sphi 0, %s107
      %s108 = sphi 0, %s105
      %s109 = sphi 0, %s108
      %s125 = sphi 0, %s109
      %s131 = sphi 0, %s133
      %s134 = sphi 0, %s131
      %s135 = sphi 0, %s134
      %s151 = sphi 0, %s135
    $region4: #{sinkhorn_distance.1} parent=1 // loop_header_branch
      %20 = sbr.rel (%p18) target = $region8
    $region5: #{sinkhorn_distance.1} parent=1 // loop_body
      %s22 = ssub.s32 %s17, 1
      %s23 = ssub.s32 %s17, 2
      %s24 = sadd.s32 %s17, 1
      %s25 = ssub.s32 %s17, %s24
      %p26 = scmp.eq.s32.totalorder %s25, 0
      %s28 = sadd.s32 %s27, 1
      %s29 = scalar_select %p26, %s27, %s28
      %p32 = pneg %p26
      %p33 = scmp.eq.s32.totalorder %s17, 1
      %p34 = por %p32, %p33
      %p35 = scmp.ne.s32.totalorder %s27, %s30
      %p36 = scmp.eq.s32.totalorder %s17, 0
      %p37 = por %p35, %p36
      %p38 = scmp.ne.s32.totalorder %s27, %s30
      %p39 = scmp.eq.s32.totalorder %s22, 1
      %p40 = por %p38, %p39
      %p41 = scmp.ne.s32.totalorder %s30, %s31
      %p42 = scmp.eq.s32.totalorder %s22, 0
      %p43 = por %p41, %p42
      %p44 = scmp.ne.s32.totalorder %s30, %s31
      %p45 = scmp.eq.s32.totalorder %s23, 1
      %p46 = por %p44, %p45
      %p48 = scmp.ne.s32.totalorder %s31, %s47
      %p49 = scmp.eq.s32.totalorder %s23, 0
      %p50 = por %p48, %p49
      %s51 = ssub.s32 %s17, %s24
      %p52 = scmp.eq.s32.totalorder %s51, 0
      %s54 = sadd.s32 %s53, 1
      %s55 = scalar_select %p52, %s53, %s54
      %p58 = pneg %p52
      %p59 = scmp.eq.s32.totalorder %s17, 1
      %p60 = por %p58, %p59
      %p61 = scmp.ne.s32.totalorder %s53, %s56
      %p62 = scmp.eq.s32.totalorder %s17, 0
      %p63 = por %p61, %p62
      %p64 = scmp.ne.s32.totalorder %s53, %s56
      %p65 = scmp.eq.s32.totalorder %s22, 1
      %p66 = por %p64, %p65
      %p67 = scmp.ne.s32.totalorder %s56, %s57
      %p68 = scmp.eq.s32.totalorder %s22, 0
      %p69 = por %p67, %p68
      %p70 = scmp.ne.s32.totalorder %s56, %s57
      %p71 = scmp.eq.s32.totalorder %s23, 1
      %p72 = por %p70, %p71
      %p74 = scmp.ne.s32.totalorder %s57, %s73
      %p75 = scmp.eq.s32.totalorder %s23, 0
      %p76 = por %p74, %p75
      %s77 = ssub.s32 %s17, %s24
      %p78 = scmp.eq.s32.totalorder %s77, 0
      %s80 = sadd.s32 %s79, 1
      %s81 = scalar_select %p78, %s79, %s80
      %p84 = pneg %p78
      %p85 = scmp.eq.s32.totalorder %s17, 1
      %p86 = por %p84, %p85
      %p87 = scmp.ne.s32.totalorder %s79, %s82
      %p88 = scmp.eq.s32.totalorder %s17, 0
      %p89 = por %p87, %p88
      %p90 = scmp.ne.s32.totalorder %s79, %s82
      %p91 = scmp.eq.s32.totalorder %s22, 1
      %p92 = por %p90, %p91
      %p93 = scmp.ne.s32.totalorder %s82, %s83
      %p94 = scmp.eq.s32.totalorder %s22, 0
      %p95 = por %p93, %p94
      %p96 = scmp.ne.s32.totalorder %s82, %s83
      %p97 = scmp.eq.s32.totalorder %s23, 1
      %p98 = por %p96, %p97
      %p100 = scmp.ne.s32.totalorder %s83, %s99
      %p101 = scmp.eq.s32.totalorder %s23, 0
      %p102 = por %p100, %p101
      %s103 = ssub.s32 %s17, %s24
      %p104 = scmp.eq.s32.totalorder %s103, 0
      %s106 = sadd.s32 %s105, 1
      %s107 = scalar_select %p104, %s105, %s106
      %p110 = pneg %p104
      %p111 = scmp.eq.s32.totalorder %s17, 1
      %p112 = por %p110, %p111
      %p113 = scmp.ne.s32.totalorder %s105, %s108
      %p114 = scmp.eq.s32.totalorder %s17, 0
      %p115 = por %p113, %p114
      %p116 = scmp.ne.s32.totalorder %s105, %s108
      %p117 = scmp.eq.s32.totalorder %s22, 1
      %p118 = por %p116, %p117
      %p119 = scmp.ne.s32.totalorder %s108, %s109
      %p120 = scmp.eq.s32.totalorder %s22, 0
      %p121 = por %p119, %p120
      %p122 = scmp.ne.s32.totalorder %s108, %s109
      %p123 = scmp.eq.s32.totalorder %s23, 1
      %p124 = por %p122, %p123
      %p126 = scmp.ne.s32.totalorder %s109, %s125
      %p127 = scmp.eq.s32.totalorder %s23, 0
      %p128 = por %p126, %p127
      %s129 = ssub.s32 %s17, %s24
      %p130 = scmp.eq.s32.totalorder %s129, 0
      %s132 = sadd.s32 %s131, 1
      %s133 = scalar_select %p130, %s131, %s132
      %p136 = pneg %p130
      %p137 = scmp.eq.s32.totalorder %s17, 1
      %p138 = por %p136, %p137
      %p139 = scmp.ne.s32.totalorder %s131, %s134
      %p140 = scmp.eq.s32.totalorder %s17, 0
      %p141 = por %p139, %p140
      %p142 = scmp.ne.s32.totalorder %s131, %s134
      %p143 = scmp.eq.s32.totalorder %s22, 1
      %p144 = por %p142, %p143
      %p145 = scmp.ne.s32.totalorder %s134, %s135
      %p146 = scmp.eq.s32.totalorder %s22, 0
      %p147 = por %p145, %p146
      %p148 = scmp.ne.s32.totalorder %s134, %s135
      %p149 = scmp.eq.s32.totalorder %s23, 1
      %p150 = por %p148, %p149
      %p152 = scmp.ne.s32.totalorder %s135, %s151
      %p153 = scmp.eq.s32.totalorder %s23, 0
      %p154 = por %p152, %p153
      %p155 = scmp.le.s32.totalorder 1, %s17
      %p156 = scmp.lt.s32.totalorder %s17, 3
      %p157 = pnand %p155, %p156
      %p158 = pneg %p157
      // Predicated region
      $region9: #{sinkhorn_distance.1} parent=5 // pred_check
        _
      $region10: #{sinkhorn_distance.1} parent=5 // pred_check_branch
        %160 = sbr.rel (%p157) target = $region12
      $region11: #{sinkhorn_distance.1} parent=5 // pred_region
        %s161 = ssub.s32 %s17, 1
      $region12: #{sinkhorn_distance.1} parent=5 // pred_fallthru
        _
      %p162 = scmp.lt.s32.totalorder %s17, 2
      // Predicated region
      $region13: #{sinkhorn_distance.1} parent=5 // pred_check
        %p163 = pneg %p162
      $region14: #{sinkhorn_distance.1} parent=5 // pred_check_branch
        %165 = sbr.rel (%p163) target = $region16
      $region15: #{sinkhorn_distance.1} parent=5 // pred_region
        // Predicated region
        $region17: #{sinkhorn_distance.1} parent=15 // pred_check
          %p166 = pneg %p37
        $region18: #{sinkhorn_distance.1} parent=15 // pred_check_branch
          %168 = sbr.rel (%p166) target = $region20
        $region19: #{sinkhorn_distance.1} parent=15 // pred_region
          %p169 = scmp.lt.s32.totalorder %s17, 1
          %s170 = scalar_select %p169, %s17, 1
          %s171 = smul.addr %s170, 2
          %s172 = smul.addr %s171, 8
          %s173 = scalar_lea.vmem %s0, %s172
        $region20: #{sinkhorn_distance.1} parent=15 // pred_fallthru
          _
        // Predicated region
        $region21: #{sinkhorn_distance.1} parent=15 // pred_check
          %p174 = pneg %p63
        $region22: #{sinkhorn_distance.1} parent=15 // pred_check_branch
          %176 = sbr.rel (%p174) target = $region24
        $region23: #{sinkhorn_distance.1} parent=15 // pred_region
          %p177 = scmp.lt.s32.totalorder %s17, 1
          %s178 = scalar_select %p177, %s17, 1
          %s179 = smul.addr %s178, 2
          %s180 = smul.addr %s179, 8
          %s181 = scalar_lea.vmem %s1, %s180
        $region24: #{sinkhorn_distance.1} parent=15 // pred_fallthru
          _
      $region16: #{sinkhorn_distance.1} parent=5 // pred_fallthru
        _
      %p182 = scmp.le.s32.totalorder 1, %s17
      %p183 = scmp.lt.s32.totalorder %s17, 3
      %p184 = pnand %p182, %p183
      %p185 = pneg %p184
      // Predicated region
      $region25: #{sinkhorn_distance.1} parent=5 // pred_check
        _
      $region26: #{sinkhorn_distance.1} parent=5 // pred_check_branch
        %187 = sbr.rel (%p184) target = $region28
      $region27: #{sinkhorn_distance.1} parent=5 // pred_region
        %s188 = ssub.s32 %s17, 1
        %p189 = scmp.lt.s32.totalorder %s22, 1
        %s190 = scalar_select %p189, %s22, 1
        %s191 = smul.addr %s190, 2
        %s192 = smul.addr %s191, 8
        %s193 = scalar_lea.vmem %s0, %s192
        %p194 = pneg %p43
        %p195 = pneg %p40
        %p196 = scmp.lt.s32.totalorder %s22, 1
        %s197 = scalar_select %p196, %s22, 1
        %s198 = smul.addr %s197, 2
        %s199 = smul.addr %s198, 8
        %s200 = scalar_lea.vmem %s1, %s199
        %p201 = pneg %p69
        %p202 = pneg %p66
        %p203 = pneg %p95
        %p204 = pneg %p92
        %p205 = scmp.lt.s32.totalorder %s22, 1
        %s206 = scalar_select %p205, %s22, 1
        %s207 = scalar_lea.vmem %s2, %s206
        %p208 = pneg %p121
        %p209 = pneg %p118
        %s210 = sand.u32 %s108, 1
        %s211 = scalar_lea.sflag [#allocation3], %s210
        %s212 = sand.u32 %s108, 1
        %s213 = smul.addr %s212, 16
        %s214 = scalar_lea.vmem [#allocation2], %s213
        %p215 = pneg %p147
        %p216 = pneg %p144
        %s217 = sand.u32 %s134, 1
        %s218 = scalar_lea.sflag [#allocation5], %s217
        %s219 = sand.u32 %s134, 1
        %s220 = smul.addr %s219, 16
        %s221 = scalar_lea.vmem [#allocation4], %s220
        %p222 = scmp.lt.s32.totalorder %s22, 1
        %s223 = scalar_select %p222, %s22, 1
        %s224 = smul.addr %s223, 2
        %s225 = smul.addr %s224, 8
        %s226 = scalar_lea.vmem %s0, %s225
        %p227 = scmp.lt.s32.totalorder %s22, 1
        %s228 = scalar_select %p227, %s22, 1
        %s229 = smul.addr %s228, 2
        %s230 = smul.addr %s229, 8
        %s231 = scalar_lea.vmem %s1, %s230
        %p232 = scmp.lt.s32.totalorder %s22, 1
        %s233 = scalar_select %p232, %s22, 1
        %s234 = scalar_lea.vmem %s2, %s233
        %v235 = vld [vmem:[%s226] sm:$0xff]
        %v236 = vld [vmem:[%s226 + $0x8] sm:$0xff]
        %v237 = vld [vmem:[%s231] sm:$0xff]
        %v238 = vld [vmem:[%s231 + $0x8] sm:$0xff]
        %240 = vset.pattern.permute.xlu0 0
        %241 = vperm.xlu0 %240, %v235
        %v242 = vpop.permute.xlu0 %241
        %245 = vset.pattern.permute.xlu0 0
        %246 = vperm.xlu0 %245, %v236
        %v247 = vpop.permute.xlu0 %246
        %251 = vset.pattern.permute.xlu0 0
        %252 = vperm.xlu0 %251, %v237
        %v253 = vpop.permute.xlu0 %252
        %254 = vset.pattern.permute.xlu0 0
        %255 = vperm.xlu0 %254, %v238
        %v256 = vpop.permute.xlu0 %255
        %v257 = vlaneseq
        %v258 = vand.u32 %v257, 127
        %v259 = vlaneseq
        %v260 = vshrl.u32 %v259, 7
        %v261 = vsub.s32 %v258, %v260
        %v262 = vrot.slane %v253, %v261
        %v263 = vadd.s32 %v258, 4294967288
        %v264 = vlaneseq
        %v265 = vshrl.u32 %v264, 7
        %v266 = vsub.s32 %v263, %v265
        %v267 = vrot.slane %v256, %v266
        %vm268 = vcmask 130112
        %v269 = vsel %vm268, %v267, %v262
        %vm270 = vcmask 1042434
        %v271 = vsel %vm270, %v269, %v269
        %vm272 = vcmask 1043459
        %v273 = vsel %vm272, %v269, %v271
        %vm274 = vcmask 1044484
        %v275 = vsel %vm274, %v269, %v273
        %vm276 = vcmask 1045509
        %v277 = vsel %vm276, %v269, %v275
        %vm278 = vcmask 1046534
        %v279 = vsel %vm278, %v269, %v277
        %vm280 = vcmask 1047559
        %v281 = vsel %vm280, %v269, %v279
        %v283 = vsub.f32 %v242, %v281
        %v284 = vsub.f32 %v247, %v281
        %v285 = vmul.f32 %v283, %v283
        %v286 = vmul.f32 %v284, %v284
        %v287 = vadd.f32 %v285, 0.0
        %v288 = vadd.f32 %v286, 0.0
        %289 = vset.pattern.permute.xlu0 1
        %290 = vperm.xlu0 %289, %v235
        %v291 = vpop.permute.xlu0 %290
        %293 = vset.pattern.permute.xlu0 1
        %294 = vperm.xlu0 %293, %v236
        %v295 = vpop.permute.xlu0 %294
        %297 = vset.pattern.permute.xlu0 1
        %298 = vperm.xlu0 %297, %v237
        %v299 = vpop.permute.xlu0 %298
        %300 = vset.pattern.permute.xlu0 1
        %301 = vperm.xlu0 %300, %v238
        %v302 = vpop.permute.xlu0 %301
        %v303 = vlaneseq
        %v304 = vshrl.u32 %v303, 7
        %v305 = vsub.s32 %v258, %v304
        %v306 = vrot.slane %v299, %v305
        %v307 = vlaneseq
        %v308 = vshrl.u32 %v307, 7
        %v309 = vsub.s32 %v263, %v308
        %v310 = vrot.slane %v302, %v309
        %v311 = vsel %vm268, %v310, %v306
        %v312 = vsel %vm270, %v311, %v311
        %v313 = vsel %vm272, %v311, %v312
        %v314 = vsel %vm274, %v311, %v313
        %v315 = vsel %vm276, %v311, %v314
        %v316 = vsel %vm278, %v311, %v315
        %v317 = vsel %vm280, %v311, %v316
        %v319 = vsub.f32 %v291, %v317
        %v320 = vsub.f32 %v295, %v317
        %v321 = vmul.f32 %v319, %v319
        %v322 = vmul.f32 %v320, %v320
        %v323 = vadd.f32 %v287, %v321
        %v324 = vadd.f32 %v288, %v322
        %v325 = vmul.f32 %v323, -10.0
        %v326 = vmul.f32 %v324, -10.0
        // While loop
        $region29: #{sinkhorn_distance.1} parent=27 // loop_pre_header
          _
        $region30: #{sinkhorn_distance.1} parent=27 // loop_header
          %s328 = sphi 0, %s675
          %v329 = vphi 0.0, %v622
          %v330 = vphi 0.0, %v623
          %v331 = vphi 0.0, %v656
          %s332 = sphi inf, %s674
          %p333 = scmp.lt.s32.totalorder %s328, 100
          %p334 = scmp.ge.f32.partialorder %s332, 0.1
          %p335 = pnand %p333, %p334
          %p336 = pneg %p335
        $region31: #{sinkhorn_distance.1} parent=27 // loop_header_branch
          %338 = sbr.rel (%p335) target = $region35
        $region32: #{sinkhorn_distance.1} parent=27 // loop_body
          %v339 = vadd.f32 %v325, %v329
          %v340 = vadd.f32 %v326, %v330
          %v341 = vadd.f32 %v339, %v331
          %v342 = vadd.f32 %v340, %v331
          %vm343 = vcmask 130048
          %v344 = vsel %vm343, %v341, -inf
          %345 = vmax.xlane.f32.xlu0 %v344
          %v346 = vpop.xlane.xlu0 %345
          %v347 = vsel %vm343, %v342, -inf
          %348 = vmax.xlane.f32.xlu0 %v347
          %v349 = vpop.xlane.xlu0 %348
          %v350 = vsub.f32 %v341, %v346
          %v351 = vsub.f32 %v342, %v349
          %v352 = vmul.f32 %v350, 1.442695
          %v353 = vpow.pop %v352
          %v354 = vmul.f32 %v351, 1.442695
          %v355 = vpow.pop %v354
          %v356 = vsel %vm343, %v353, 0.0
          %357 = vadd.xlane.f32.xlu0 %v356
          %v358 = vpop.xlane.xlu0 %357
          %v359 = vsel %vm343, %v355, 0.0
          %360 = vadd.xlane.f32.xlu0 %v359
          %v361 = vpop.xlane.xlu0 %360
          %v362 = vlog2.pop %v358
          %v363 = vmul.f32 %v362, 0.6931472
          %v364 = vlog2.pop %v361
          %v365 = vmul.f32 %v364, 0.6931472
          %v366 = vadd.f32 %v363, %v346
          %v367 = vadd.f32 %v365, %v349
          %v368 = vsub.f32 -2.7725885, %v366
          %v369 = vsub.f32 -2.7725885, %v367
          %v370 = vadd.f32 %v368, %v329
          %v371 = vadd.f32 %v369, %v330
          %v372 = vadd.f32 %v325, %v370
          %v373 = vadd.f32 %v326, %v371
          %v374 = vadd.f32 %v372, %v331
          %v375 = vadd.f32 %v373, %v331
          %v376 = vsel %vm343, %v374, -inf
          %v377 = vsel %vm343, %v375, -inf
          %v378 = vmax.f32 %v376, %v377
          %v379 = vrot.slane %v378, 4
          %v380 = vmax.f32 %v378, %v379
          %v381 = vrot.slane %v380, 2
          %v382 = vmax.f32 %v380, %v381
          %v383 = vrot.slane %v382, 1
          %v384 = vmax.f32 %v382, %v383
          %v385 = vsub.f32 %v374, %v384
          %v386 = vsub.f32 %v375, %v384
          %v387 = vmul.f32 %v385, 1.442695
          %v388 = vpow.pop %v387
          %v389 = vmul.f32 %v386, 1.442695
          %v390 = vpow.pop %v389
          %v391 = vsel %vm343, %v388, 0.0
          %v392 = vsel %vm343, %v390, 0.0
          %v393 = vadd.f32 %v391, %v392
          %v394 = vrot.slane %v393, 4
          %v395 = vadd.f32 %v393, %v394
          %v396 = vrot.slane %v395, 2
          %v397 = vadd.f32 %v395, %v396
          %v398 = vrot.slane %v397, 1
          %v399 = vadd.f32 %v397, %v398
          %v400 = vlog2.pop %v399
          %v401 = vmul.f32 %v400, 0.6931472
          %v402 = vadd.f32 %v401, %v384
          %v403 = vsub.f32 -2.7725885, %v402
          %v404 = vadd.f32 %v403, %v331
          %v405 = vadd.f32 %v372, %v404
          %v406 = vadd.f32 %v373, %v404
          %v407 = vsel %vm343, %v405, -inf
          %408 = vmax.xlane.f32.xlu0 %v407
          %v409 = vpop.xlane.xlu0 %408
          %v410 = vsel %vm343, %v406, -inf
          %411 = vmax.xlane.f32.xlu0 %v410
          %v412 = vpop.xlane.xlu0 %411
          %v413 = vsub.f32 %v405, %v409
          %v414 = vsub.f32 %v406, %v412
          %v415 = vmul.f32 %v413, 1.442695
          %v416 = vpow.pop %v415
          %v417 = vmul.f32 %v414, 1.442695
          %v418 = vpow.pop %v417
          %v419 = vsel %vm343, %v416, 0.0
          %420 = vadd.xlane.f32.xlu0 %v419
          %v421 = vpop.xlane.xlu0 %420
          %v422 = vsel %vm343, %v418, 0.0
          %423 = vadd.xlane.f32.xlu0 %v422
          %v424 = vpop.xlane.xlu0 %423
          %v425 = vlog2.pop %v421
          %v426 = vmul.f32 %v425, 0.6931472
          %v427 = vlog2.pop %v424
          %v428 = vmul.f32 %v427, 0.6931472
          %v429 = vadd.f32 %v426, %v409
          %v430 = vadd.f32 %v428, %v412
          %v431 = vsub.f32 -2.7725885, %v429
          %v432 = vsub.f32 -2.7725885, %v430
          %v433 = vadd.f32 %v431, %v370
          %v434 = vadd.f32 %v432, %v371
          %v435 = vadd.f32 %v325, %v433
          %v436 = vadd.f32 %v326, %v434
          %v437 = vadd.f32 %v435, %v404
          %v438 = vadd.f32 %v436, %v404
          %v439 = vsel %vm343, %v437, -inf
          %v440 = vsel %vm343, %v438, -inf
          %v441 = vmax.f32 %v439, %v440
          %v442 = vrot.slane %v441, 4
          %v443 = vmax.f32 %v441, %v442
          %v444 = vrot.slane %v443, 2
          %v445 = vmax.f32 %v443, %v444
          %v446 = vrot.slane %v445, 1
          %v447 = vmax.f32 %v445, %v446
          %v448 = vsub.f32 %v437, %v447
          %v449 = vsub.f32 %v438, %v447
          %v450 = vmul.f32 %v448, 1.442695
          %v451 = vpow.pop %v450
          %v452 = vmul.f32 %v449, 1.442695
          %v453 = vpow.pop %v452
          %v454 = vsel %vm343, %v451, 0.0
          %v455 = vsel %vm343, %v453, 0.0
          %v456 = vadd.f32 %v454, %v455
          %v457 = vrot.slane %v456, 4
          %v458 = vadd.f32 %v456, %v457
          %v459 = vrot.slane %v458, 2
          %v460 = vadd.f32 %v458, %v459
          %v461 = vrot.slane %v460, 1
          %v462 = vadd.f32 %v460, %v461
          %v463 = vlog2.pop %v462
          %v464 = vmul.f32 %v463, 0.6931472
          %v465 = vadd.f32 %v464, %v447
          %v466 = vsub.f32 -2.7725885, %v465
          %v467 = vadd.f32 %v466, %v404
          %v468 = vadd.f32 %v435, %v467
          %v469 = vadd.f32 %v436, %v467
          %v470 = vsel %vm343, %v468, -inf
          %471 = vmax.xlane.f32.xlu0 %v470
          %v472 = vpop.xlane.xlu0 %471
          %v473 = vsel %vm343, %v469, -inf
          %474 = vmax.xlane.f32.xlu0 %v473
          %v475 = vpop.xlane.xlu0 %474
          %v476 = vsub.f32 %v468, %v472
          %v477 = vsub.f32 %v469, %v475
          %v478 = vmul.f32 %v476, 1.442695
          %v479 = vpow.pop %v478
          %v480 = vmul.f32 %v477, 1.442695
          %v481 = vpow.pop %v480
          %v482 = vsel %vm343, %v479, 0.0
          %483 = vadd.xlane.f32.xlu0 %v482
          %v484 = vpop.xlane.xlu0 %483
          %v485 = vsel %vm343, %v481, 0.0
          %486 = vadd.xlane.f32.xlu0 %v485
          %v487 = vpop.xlane.xlu0 %486
          %v488 = vlog2.pop %v484
          %v489 = vmul.f32 %v488, 0.6931472
          %v490 = vlog2.pop %v487
          %v491 = vmul.f32 %v490, 0.6931472
          %v492 = vadd.f32 %v489, %v472
          %v493 = vadd.f32 %v491, %v475
          %v494 = vsub.f32 -2.7725885, %v492
          %v495 = vsub.f32 -2.7725885, %v493
          %v496 = vadd.f32 %v494, %v433
          %v497 = vadd.f32 %v495, %v434
          %v498 = vadd.f32 %v325, %v496
          %v499 = vadd.f32 %v326, %v497
          %v500 = vadd.f32 %v498, %v467
          %v501 = vadd.f32 %v499, %v467
          %v502 = vsel %vm343, %v500, -inf
          %v503 = vsel %vm343, %v501, -inf
          %v504 = vmax.f32 %v502, %v503
          %v505 = vrot.slane %v504, 4
          %v506 = vmax.f32 %v504, %v505
          %v507 = vrot.slane %v506, 2
          %v508 = vmax.f32 %v506, %v507
          %v509 = vrot.slane %v508, 1
          %v510 = vmax.f32 %v508, %v509
          %v511 = vsub.f32 %v500, %v510
          %v512 = vsub.f32 %v501, %v510
          %v513 = vmul.f32 %v511, 1.442695
          %v514 = vpow.pop %v513
          %v515 = vmul.f32 %v512, 1.442695
          %v516 = vpow.pop %v515
          %v517 = vsel %vm343, %v514, 0.0
          %v518 = vsel %vm343, %v516, 0.0
          %v519 = vadd.f32 %v517, %v518
          %v520 = vrot.slane %v519, 4
          %v521 = vadd.f32 %v519, %v520
          %v522 = vrot.slane %v521, 2
          %v523 = vadd.f32 %v521, %v522
          %v524 = vrot.slane %v523, 1
          %v525 = vadd.f32 %v523, %v524
          %v526 = vlog2.pop %v525
          %v527 = vmul.f32 %v526, 0.6931472
          %v528 = vadd.f32 %v527, %v510
          %v529 = vsub.f32 -2.7725885, %v528
          %v530 = vadd.f32 %v529, %v467
          %v531 = vadd.f32 %v498, %v530
          %v532 = vadd.f32 %v499, %v530
          %v533 = vsel %vm343, %v531, -inf
          %534 = vmax.xlane.f32.xlu0 %v533
          %v535 = vpop.xlane.xlu0 %534
          %v536 = vsel %vm343, %v532, -inf
          %537 = vmax.xlane.f32.xlu0 %v536
          %v538 = vpop.xlane.xlu0 %537
          %v539 = vsub.f32 %v531, %v535
          %v540 = vsub.f32 %v532, %v538
          %v541 = vmul.f32 %v539, 1.442695
          %v542 = vpow.pop %v541
          %v543 = vmul.f32 %v540, 1.442695
          %v544 = vpow.pop %v543
          %v545 = vsel %vm343, %v542, 0.0
          %546 = vadd.xlane.f32.xlu0 %v545
          %v547 = vpop.xlane.xlu0 %546
          %v548 = vsel %vm343, %v544, 0.0
          %549 = vadd.xlane.f32.xlu0 %v548
          %v550 = vpop.xlane.xlu0 %549
          %v551 = vlog2.pop %v547
          %v552 = vmul.f32 %v551, 0.6931472
          %v553 = vlog2.pop %v550
          %v554 = vmul.f32 %v553, 0.6931472
          %v555 = vadd.f32 %v552, %v535
          %v556 = vadd.f32 %v554, %v538
          %v557 = vsub.f32 -2.7725885, %v555
          %v558 = vsub.f32 -2.7725885, %v556
          %v559 = vadd.f32 %v557, %v496
          %v560 = vadd.f32 %v558, %v497
          %v561 = vadd.f32 %v325, %v559
          %v562 = vadd.f32 %v326, %v560
          %v563 = vadd.f32 %v561, %v530
          %v564 = vadd.f32 %v562, %v530
          %v565 = vsel %vm343, %v563, -inf
          %v566 = vsel %vm343, %v564, -inf
          %v567 = vmax.f32 %v565, %v566
          %v568 = vrot.slane %v567, 4
          %v569 = vmax.f32 %v567, %v568
          %v570 = vrot.slane %v569, 2
          %v571 = vmax.f32 %v569, %v570
          %v572 = vrot.slane %v571, 1
          %v573 = vmax.f32 %v571, %v572
          %v574 = vsub.f32 %v563, %v573
          %v575 = vsub.f32 %v564, %v573
          %v576 = vmul.f32 %v574, 1.442695
          %v577 = vpow.pop %v576
          %v578 = vmul.f32 %v575, 1.442695
          %v579 = vpow.pop %v578
          %v580 = vsel %vm343, %v577, 0.0
          %v581 = vsel %vm343, %v579, 0.0
          %v582 = vadd.f32 %v580, %v581
          %v583 = vrot.slane %v582, 4
          %v584 = vadd.f32 %v582, %v583
          %v585 = vrot.slane %v584, 2
          %v586 = vadd.f32 %v584, %v585
          %v587 = vrot.slane %v586, 1
          %v588 = vadd.f32 %v586, %v587
          %v589 = vlog2.pop %v588
          %v590 = vmul.f32 %v589, 0.6931472
          %v591 = vadd.f32 %v590, %v573
          %v592 = vsub.f32 -2.7725885, %v591
          %v593 = vadd.f32 %v592, %v530
          %v594 = vadd.f32 %v561, %v593
          %v595 = vadd.f32 %v562, %v593
          %v596 = vsel %vm343, %v594, -inf
          %597 = vmax.xlane.f32.xlu0 %v596
          %v598 = vpop.xlane.xlu0 %597
          %v599 = vsel %vm343, %v595, -inf
          %600 = vmax.xlane.f32.xlu0 %v599
          %v601 = vpop.xlane.xlu0 %600
          %v602 = vsub.f32 %v594, %v598
          %v603 = vsub.f32 %v595, %v601
          %v604 = vmul.f32 %v602, 1.442695
          %v605 = vpow.pop %v604
          %v606 = vmul.f32 %v603, 1.442695
          %v607 = vpow.pop %v606
          %v608 = vsel %vm343, %v605, 0.0
          %609 = vadd.xlane.f32.xlu0 %v608
          %v610 = vpop.xlane.xlu0 %609
          %v611 = vsel %vm343, %v607, 0.0
          %612 = vadd.xlane.f32.xlu0 %v611
          %v613 = vpop.xlane.xlu0 %612
          %v614 = vlog2.pop %v610
          %v615 = vmul.f32 %v614, 0.6931472
          %v616 = vlog2.pop %v613
          %v617 = vmul.f32 %v616, 0.6931472
          %v618 = vadd.f32 %v615, %v598
          %v619 = vadd.f32 %v617, %v601
          %v620 = vsub.f32 -2.7725885, %v618
          %v621 = vsub.f32 -2.7725885, %v619
          %v622 = vadd.f32 %v620, %v559
          %v623 = vadd.f32 %v621, %v560
          %v624 = vadd.f32 %v325, %v622
          %v625 = vadd.f32 %v326, %v623
          %v626 = vadd.f32 %v624, %v593
          %v627 = vadd.f32 %v625, %v593
          %v628 = vsel %vm343, %v626, -inf
          %v629 = vsel %vm343, %v627, -inf
          %v630 = vmax.f32 %v628, %v629
          %v631 = vrot.slane %v630, 4
          %v632 = vmax.f32 %v630, %v631
          %v633 = vrot.slane %v632, 2
          %v634 = vmax.f32 %v632, %v633
          %v635 = vrot.slane %v634, 1
          %v636 = vmax.f32 %v634, %v635
          %v637 = vsub.f32 %v626, %v636
          %v638 = vsub.f32 %v627, %v636
          %v639 = vmul.f32 %v637, 1.442695
          %v640 = vpow.pop %v639
          %v641 = vmul.f32 %v638, 1.442695
          %v642 = vpow.pop %v641
          %v643 = vsel %vm343, %v640, 0.0
          %v644 = vsel %vm343, %v642, 0.0
          %v645 = vadd.f32 %v643, %v644
          %v646 = vrot.slane %v645, 4
          %v647 = vadd.f32 %v645, %v646
          %v648 = vrot.slane %v647, 2
          %v649 = vadd.f32 %v647, %v648
          %v650 = vrot.slane %v649, 1
          %v651 = vadd.f32 %v649, %v650
          %v652 = vlog2.pop %v651
          %v653 = vmul.f32 %v652, 0.6931472
          %v654 = vadd.f32 %v653, %v636
          %v655 = vsub.f32 -2.7725885, %v654
          %v656 = vadd.f32 %v655, %v593
          %v657 = vsub.f32 %v622, %v559
          %v658 = vsub.f32 %v623, %v560
          %v659 = vand.u32 2147483647, %v657
          %v660 = vand.u32 2147483647, %v658
          %vm661 = vcmask 7168
          %v662 = vsel %vm661, %v659, 0.0
          %v663 = vsel %vm661, %v660, 0.0
          %v664 = vadd.f32 %v662, %v663
          %665 = vadd.xlane.f32.xlu0 %v664
          %v666 = vpop.xlane.xlu0 %665
          %v667 = vrot.slane %v666, 4
          %v668 = vadd.f32 %v666, %v667
          %v669 = vrot.slane %v668, 2
          %v670 = vadd.f32 %v668, %v669
          %v671 = vrot.slane %v670, 1
          %v672 = vadd.f32 %v670, %v671
          %s673 = vtos %v672
          %s674 = smul.f32 %s673, 0.1
          %s675 = sadd.s32 %s328, 5
        $region33: #{sinkhorn_distance.1} parent=27 // loop_footer
          _
        $region34: #{sinkhorn_distance.1} parent=27 // loop_footer_branch
          %327 = sbr.rel target = $region30
        $region35: #{sinkhorn_distance.1} parent=27 // loop_exit
          _
        %v676 = vadd.f32 %v325, %v329
        %v677 = vadd.f32 %v326, %v330
        %v678 = vadd.f32 %v676, %v331
        %v679 = vadd.f32 %v677, %v331
        %v680 = vmul.f32 %v678, 1.442695
        %v681 = vpow.pop %v680
        %v682 = vmul.f32 %v679, 1.442695
        %v683 = vpow.pop %v682
        %vm684 = vcmask 130048
        %685 = vst.msk [vmem:[%s221] sm:$0xff] %vm684, %v323
        %686 = vst.msk [vmem:[%s221 + $0x8] sm:$0xff] %vm684, %v324
        %687 = vst.msk [vmem:[%s214] sm:$0xff] %vm684, %v681
        %688 = vst.msk [vmem:[%s214 + $0x8] sm:$0xff] %vm684, %v683
        %v689 = vmul.f32 %v681, %v323
        %v690 = vmul.f32 %v683, %v324
        %v691 = vsel %vm684, %v689, 0.0
        %v692 = vsel %vm684, %v690, 0.0
        %v693 = vadd.f32 %v691, %v692
        %694 = vadd.xlane.f32.xlu0 %v693
        %v695 = vpop.xlane.xlu0 %694
        %v696 = vrot.slane %v695, 4
        %v697 = vadd.f32 %v695, %v696
        %v698 = vrot.slane %v697, 2
        %v699 = vadd.f32 %v697, %v698
        %v700 = vrot.slane %v699, 1
        %v701 = vadd.f32 %v699, %v700
        %s702 = vtos %v701
        %v703 = vstv %s702
        %vm704 = vcmask 0
        %705 = vst.msk [vmem:[%s234] sm:$0x1] %vm704, %v703
        %p706 = scmp.lt.s32.totalorder %s22, 1
        %s707 = scalar_select %p706, %s22, 1
        %s708 = scalar_lea.vmem %s2, %s707
        %s709 = sand.u32 %s108, 1
        %s710 = scalar_lea.sflag [#allocation3], %s709
        %s711 = sand.u32 %s108, 1
        %s712 = smul.addr %s711, 16
        %s713 = scalar_lea.vmem [#allocation2], %s712
        %s714 = sand.u32 %s134, 1
        %s715 = scalar_lea.sflag [#allocation5], %s714
        %s716 = sand.u32 %s134, 1
        %s717 = smul.addr %s716, 16
        %s718 = scalar_lea.vmem [#allocation4], %s717
        // Predicated region
        $region36: #{sinkhorn_distance.1} parent=27 // pred_check
          %p719 = pneg %p92
        $region37: #{sinkhorn_distance.1} parent=27 // pred_check_branch
          %721 = sbr.rel (%p719) target = $region39
        $region38: #{sinkhorn_distance.1} parent=27 // pred_region
          _
        $region39: #{sinkhorn_distance.1} parent=27 // pred_fallthru
          _
        // Predicated region
        $region40: #{sinkhorn_distance.1} parent=27 // pred_check
          %p722 = pneg %p118
        $region41: #{sinkhorn_distance.1} parent=27 // pred_check_branch
          %724 = sbr.rel (%p722) target = $region43
        $region42: #{sinkhorn_distance.1} parent=27 // pred_region
          %s726 = ssub.s32 256, 256
          %727 = vsyncadd %s710, %s726
          %s728 = smul.addr %s22, 2
          %s729 = smul.addr %s728, 128
          %s730 = scalar_lea.hbm %s3, %s729
          %s731 = sshll.u32 %s713, 4
          %s732 = int_to_ptr.vmem [resolvable:$true] %s731
          %737 = dma.vmem_to_hbm [thread:$0]  %s732, 256, %s730, %s710, 128, 128, 8
        $region43: #{sinkhorn_distance.1} parent=27 // pred_fallthru
          _
        // Predicated region
        $region44: #{sinkhorn_distance.1} parent=27 // pred_check
          %p738 = pneg %p144
        $region45: #{sinkhorn_distance.1} parent=27 // pred_check_branch
          %740 = sbr.rel (%p738) target = $region47
        $region46: #{sinkhorn_distance.1} parent=27 // pred_region
          %s742 = ssub.s32 256, 256
          %743 = vsyncadd %s715, %s742
          %s744 = smul.addr %s22, 2
          %s745 = smul.addr %s744, 128
          %s746 = scalar_lea.hbm %s4, %s745
          %s747 = sshll.u32 %s718, 4
          %s748 = int_to_ptr.vmem [resolvable:$true] %s747
          %753 = dma.vmem_to_hbm [thread:$0]  %s748, 256, %s746, %s715, 128, 128, 8
        $region47: #{sinkhorn_distance.1} parent=27 // pred_fallthru
          _
      $region28: #{sinkhorn_distance.1} parent=5 // pred_fallthru
        _
      %p754 = scmp.le.s32.totalorder 2, %s17
      // Predicated region
      $region48: #{sinkhorn_distance.1} parent=5 // pred_check
        %p755 = pneg %p754
      $region49: #{sinkhorn_distance.1} parent=5 // pred_check_branch
        %757 = sbr.rel (%p755) target = $region51
      $region50: #{sinkhorn_distance.1} parent=5 // pred_region
        %s758 = ssub.s32 %s17, 2
        // Predicated region
        $region52: #{sinkhorn_distance.1} parent=50 // pred_check
          %p759 = pneg %p98
        $region53: #{sinkhorn_distance.1} parent=50 // pred_check_branch
          %761 = sbr.rel (%p759) target = $region55
        $region54: #{sinkhorn_distance.1} parent=50 // pred_region
          %p762 = scmp.lt.s32.totalorder %s23, 1
          %s763 = scalar_select %p762, %s23, 1
          %s764 = scalar_lea.vmem %s2, %s763
        $region55: #{sinkhorn_distance.1} parent=50 // pred_fallthru
          _
        // Predicated region
        $region56: #{sinkhorn_distance.1} parent=50 // pred_check
          %p765 = pneg %p124
        $region57: #{sinkhorn_distance.1} parent=50 // pred_check_branch
          %767 = sbr.rel (%p765) target = $region59
        $region58: #{sinkhorn_distance.1} parent=50 // pred_region
          %s768 = sand.u32 %s109, 1
          %s769 = scalar_lea.sflag [#allocation3], %s768
          %s770 = sand.u32 %s109, 1
          %s771 = smul.addr %s770, 16
          %s772 = scalar_lea.vmem [#allocation2], %s771
          %773 = dma.done %s769, 256
        $region59: #{sinkhorn_distance.1} parent=50 // pred_fallthru
          _
        // Predicated region
        $region60: #{sinkhorn_distance.1} parent=50 // pred_check
          %p774 = pneg %p150
        $region61: #{sinkhorn_distance.1} parent=50 // pred_check_branch
          %776 = sbr.rel (%p774) target = $region63
        $region62: #{sinkhorn_distance.1} parent=50 // pred_region
          %s777 = sand.u32 %s135, 1
          %s778 = scalar_lea.sflag [#allocation5], %s777
          %s779 = sand.u32 %s135, 1
          %s780 = smul.addr %s779, 16
          %s781 = scalar_lea.vmem [#allocation4], %s780
          %782 = dma.done %s778, 256
        $region63: #{sinkhorn_distance.1} parent=50 // pred_fallthru
          _
      $region51: #{sinkhorn_distance.1} parent=5 // pred_fallthru
        _
    $region6: #{sinkhorn_distance.1} parent=1 // loop_footer
      %s21 = sadd.s32 1, %s17
    $region7: #{sinkhorn_distance.1} parent=1 // loop_footer_branch
      %16 = sbr.rel target = $region3
    $region8: #{sinkhorn_distance.1} parent=1 // loop_exit
      _
    %783 = vsyncpa [#allocation3], 1
    %s784 = scalar_lea.sflag [#allocation3], 1
    %785 = vsyncpa %s784, 1
    %786 = vsyncpa [#allocation5], 1
    %s787 = scalar_lea.sflag [#allocation5], 1
    %788 = vsyncpa %s787, 1

</llo_original>
